<compile_context>
chip_gen: v5e
topology: v5e:2x2
jax: 0.10.0
libtpu: 0.0.40
codegen_flags: <defaults>
</compile_context>

<pallas_src>
import jax
import jax.numpy as jnp
from jax import lax
from jax.experimental import pallas as pl
from jax.experimental.pallas import tpu as pltpu


def _mfm_matmul_kernel(p_ref, w_ref, b_ref, o_ref):
    # p_ref: (1, 9*Cin, H*W)  im2col patches for one batch element (lane-dense)
    # w_ref: (2*Cout, 9*Cin)  fused conv weights
    # b_ref: (2*Cout, 1)      conv bias as a column (row-wise broadcast)
    # o_ref: (1, Cout, H*W)   MFM output (lane-dense store)
    cout = o_ref.shape[1]

    # Single fused matmul over K = 9*Cin; f32 accumulation on the MXU.
    acc = jnp.dot(w_ref[...], p_ref[0],
                  preferred_element_type=jnp.float32)        # (2*Cout, H*W)
    acc = acc + b_ref[...]                                   # broadcast over lanes

    # MFM: elementwise max of the two channel halves (sublane-aligned slices).
    o_ref[0] = jnp.maximum(acc[:cout, :], acc[cout:, :]).astype(o_ref.dtype)


def mfm_forward(x_nchw, w_oihw, bias, out_channels):
    """x_nchw: (N, Cin, H, W). w_oihw: (2*Cout, Cin, 3, 3). bias: (2*Cout,)."""
    N, Cin, H, W = x_nchw.shape
    Cout = out_channels
    K = 9 * Cin
    assert w_oihw.shape == (2 * Cout, Cin, 3, 3)

    # ---- wrapper-side im2col, tap-major K ordering: k = (kh*3 + kw)*Cin + c ----
    # TODO(synk): for large H/W tile the im2col + matmul over H-strips inside the
    # kernel (with a 2-row halo) instead of materializing full patches in HBM.
    x_pad = jnp.pad(x_nchw, ((0, 0), (0, 0), (1, 1), (1, 1)))
    taps = jnp.stack(
        [x_pad[:, :, kh:kh + H, kw:kw + W] for kh in range(3) for kw in range(3)],
        axis=1)                                              # (N, 9, Cin, H, W)
    patches = taps.reshape(N, K, H * W)                      # contiguous reshape

    # Weights (2*Cout, Cin, 3, 3) -> (2*Cout, 9*Cin) with matching K ordering.
    w_mat = jnp.transpose(w_oihw, (0, 2, 3, 1)).reshape(2 * Cout, K)
    b_col = bias.reshape(2 * Cout, 1)

    out = pl.pallas_call(
        _mfm_matmul_kernel,
        out_shape=jax.ShapeDtypeStruct((N, Cout, H * W), x_nchw.dtype),
        grid_spec=pltpu.PrefetchScalarGridSpec(
            num_scalar_prefetch=0,
            grid=(N,),
            in_specs=[
                pl.BlockSpec((1, K, H * W), lambda b: (b, 0, 0)),
                pl.BlockSpec((2 * Cout, K), lambda b: (0, 0)),
                pl.BlockSpec((2 * Cout, 1), lambda b: (0, 0)),
            ],
            out_specs=pl.BlockSpec((1, Cout, H * W), lambda b: (b, 0, 0)),
        ),
        compiler_params=pltpu.CompilerParams(
            dimension_semantics=("parallel",)),
    )(patches, w_mat, b_col)

    # (N, Cout, H*W) -> (N, Cout, H, W): pure reshape, already NCHW.
    return out.reshape(N, Cout, H, W)


def mfm_reference(x_nchw, w_oihw, bias, out_channels):
    """Pure-JAX reference (lax conv) for correctness checking."""
    y = lax.conv_general_dilated(
        x_nchw, w_oihw,
        window_strides=(1, 1), padding=((1, 1), (1, 1)),
        dimension_numbers=("NCHW", "OIHW", "NCHW"),
    ) + bias.reshape(1, -1, 1, 1)
    return jnp.maximum(y[:, :out_channels], y[:, out_channels:])


if __name__ == "__main__":
    # Small shapes consistent with the module: batch=2, in_channels=4, 16x16 spatial.
    N, C_in, H, W = 2, 4, 16, 16
    C_out = 8  # mfm out_channels; conv produces 2*C_out = 16 channels

    key = jax.random.PRNGKey(0)
    kx, kw, kb = jax.random.split(key, 3)

    x = jax.random.normal(kx, (N, C_in, H, W), dtype=jnp.float32)

    # Deterministic synthetic parameters (Conv2d(C_in, 2*C_out, 3, 1, 1) shapes).
    fan_in = C_in * 3 * 3
    bound = 1.0 / (fan_in ** 0.5)
    w = jax.random.uniform(kw, (2 * C_out, C_in, 3, 3), jnp.float32, -bound, bound)
    b = jax.random.uniform(kb, (2 * C_out,), jnp.float32, -bound, bound)

    out = mfm_forward(x, w, b, C_out)
    out = jax.block_until_ready(out)

    ref = mfm_reference(x, w, b, C_out)
    assert out.shape == (N, C_out, H, W)
    assert jnp.allclose(out, ref, atol=1e-4, rtol=1e-4), "mismatch vs reference"

    print("KERNEL_OK")
</pallas_src>

<mosaic_0001>
module attributes {stable_mosaic.version = 11 : i64} {
  func.func @_mfm_matmul_kernel(%arg0: i32, %arg1: memref<1x36x256xf32, #tpu.memory_space<vmem>>, %arg2: memref<16x36xf32, #tpu.memory_space<vmem>>, %arg3: memref<16x1xf32, #tpu.memory_space<vmem>>, %arg4: memref<1x8x256xf32, #tpu.memory_space<vmem>>) attributes {dimension_semantics = [#tpu.dimension_semantics<parallel>], iteration_bounds = array<i64: 2>, scalar_prefetch = 0 : i64, scratch_operands = 0 : i64, tpu.core_type = #tpu.core_type<tc>, window_params = [{transform_indices = @transform_0, window_bounds = array<i64: 1, 36, 256>}, {pipeline_mode = #tpu.pipeline_mode<synchronous>, transform_indices = @transform_1, window_bounds = array<i64: 16, 36>}, {pipeline_mode = #tpu.pipeline_mode<synchronous>, transform_indices = @transform_2, window_bounds = array<i64: 16, 1>}, {transform_indices = @transform_3, window_bounds = array<i64: 1, 8, 256>}]} {
    %c0 = arith.constant 0 : index
    %c0_0 = arith.constant 0 : index
    %0 = vector.load %arg2[%c0, %c0_0] : memref<16x36xf32, #tpu.memory_space<vmem>>, vector<16x36xf32>
    %c0_1 = arith.constant 0 : index
    %c0_2 = arith.constant 0 : index
    %c0_3 = arith.constant 0 : index
    %1 = vector.load %arg1[%c0_1, %c0_2, %c0_3] : memref<1x36x256xf32, #tpu.memory_space<vmem>>, vector<1x36x256xf32>
    %2 = vector.shape_cast %1 : vector<1x36x256xf32> to vector<36x256xf32>
    %cst = arith.constant dense<0.000000e+00> : vector<16x256xf32>
    %3 = tpu.matmul %0, %2, %cst {dimension_numbers = #tpu.dot_dimension_numbers<[1], [0], [0], [1], [0, 0, 1, 1], [], []>} : vector<16x36xf32>, vector<36x256xf32>, vector<16x256xf32> -> vector<16x256xf32>
    %c0_4 = arith.constant 0 : index
    %c0_5 = arith.constant 0 : index
    %4 = vector.load %arg3[%c0_4, %c0_5] : memref<16x1xf32, #tpu.memory_space<vmem>>, vector<16x1xf32>
    %5 = vector.broadcast %4 : vector<16x1xf32> to vector<16x256xf32>
    %6 = arith.addf %3, %5 : vector<16x256xf32>
    %7 = vector.extract_strided_slice %6 {offsets = [0, 0], sizes = [8, 256], strides = [1, 1]} : vector<16x256xf32> to vector<8x256xf32>
    %8 = vector.extract_strided_slice %6 {offsets = [8, 0], sizes = [8, 256], strides = [1, 1]} : vector<16x256xf32> to vector<8x256xf32>
    %9 = arith.maximumf %7, %8 : vector<8x256xf32>
    %c0_6 = arith.constant 0 : index
    %c0_7 = arith.constant 0 : index
    %c0_8 = arith.constant 0 : index
    %10 = vector.load %arg4[%c0_6, %c0_7, %c0_8] : memref<1x8x256xf32, #tpu.memory_space<vmem>>, vector<1x8x256xf32>
    %11 = vector.shape_cast %10 : vector<1x8x256xf32> to vector<8x256xf32>
    %12 = vector.shape_cast %9 : vector<8x256xf32> to vector<1x8x256xf32>
    tpu.vector_store %arg4[%c0_6, %c0_7, %c0_8], %12 {strides = array<i32>} : memref<1x8x256xf32, #tpu.memory_space<vmem>>, vector<1x8x256xf32>,
    return
  }
  func.func @transform_0(%arg0: i32) -> (i32, i32, i32) {
    %c0_i32 = arith.constant 0 : i32
    %c0_i32_0 = arith.constant 0 : i32
    %c0_i32_1 = arith.constant 0 : i32
    return %arg0, %c0_i32, %c0_i32_0 : i32, i32, i32
  }
  func.func @transform_1(%arg0: i32) -> (i32, i32) {
    %c0_i32 = arith.constant 0 : i32
    %c0_i32_0 = arith.constant 0 : i32
    %c0_i32_1 = arith.constant 0 : i32
    return %c0_i32, %c0_i32_0 : i32, i32
  }
  func.func @transform_2(%arg0: i32) -> (i32, i32) {
    %c0_i32 = arith.constant 0 : i32
    %c0_i32_0 = arith.constant 0 : i32
    %c0_i32_1 = arith.constant 0 : i32
    return %c0_i32, %c0_i32_0 : i32, i32
  }
  func.func @transform_3(%arg0: i32) -> (i32, i32, i32) {
    %c0_i32 = arith.constant 0 : i32
    %c0_i32_0 = arith.constant 0 : i32
    %c0_i32_1 = arith.constant 0 : i32
    return %arg0, %c0_i32, %c0_i32_0 : i32, i32, i32
  }
}

</mosaic_0001>

<llo_original>
// kernel: tpu_custom_call.1
$region0: #{tpu_custom_call.1}
  #allocation0 [shape = 'u32[]', space=smem, size = 0x4, offset = 0x4, fixed_abs, tag = 'smem constant byte address 0x4 - core index']
  #allocation1 [shape = 'u32[72,128]{1,0:T(1,128)}', space=vmem, size = 0x9000, scoped, tag = 'internal scratch']
  %s0 = inlined_call_operand.vmem [shape: f32[2,36,256], index: 0, kind: input, shape index: {}]
  %s1 = inlined_call_operand.vmem [shape: f32[16,36], index: 1, kind: input, shape index: {}]
  %s2 = inlined_call_operand.vmem [shape: f32[16,1], index: 2, kind: input, shape index: {}]
  %s3 = inlined_call_operand.hbm [shape: f32[2,8,256], index: 3, kind: output, shape index: {}]
  %s4 = sld [smem:[#allocation0]]
  $region45: #{tpu_custom_call.1} parent=0
    _
  %s6 = ssub.s32 1, %s4
  %s7 = scalar_select 0, %s6, %s4
  $region1: #{tpu_custom_call.1} parent=0
    #allocation2 [shape = 'u8[16384]{0}', space=vmem, size = 0x4000, scoped, tag = 'output window, operand 0']
    #allocation3 [shape = 's32[2]{0}', space=sflag, size = 0x8, scoped, tag = 'scoped memory for tpu_custom_call.1']
    %8 = vsyncpa [#allocation3], 0
    %s9 = scalar_lea.sflag [#allocation3], 1
    %10 = vsyncpa %s9, 0
    loop: start=0, step=1, limit=4
    $region2: #{tpu_custom_call.1} parent=1 // loop_pre_header
      _
    $region3: #{tpu_custom_call.1} parent=1 // loop_header
      %s12 = sphi 0, %s16
      %p13 = scmp.ge.s32.totalorder %s12, 4
      %s22 = sphi 0, %s24
      %s25 = sphi 0, %s22
      %s26 = sphi 0, %s25
      %s42 = sphi 0, %s26
      %s46 = sphi 0, %s46
      %s48 = sphi 0, %s46
      %s49 = sphi 0, %s48
      %s63 = sphi 0, %s49
      %s67 = sphi 0, %s67
      %s69 = sphi 0, %s67
      %s70 = sphi 0, %s69
      %s84 = sphi 0, %s70
      %s90 = sphi 0, %s92
      %s93 = sphi 0, %s90
      %s94 = sphi 0, %s93
      %s110 = sphi 0, %s94
    $region4: #{tpu_custom_call.1} parent=1 // loop_header_branch
      %15 = sbr.rel (%p13) target = $region8
    $region5: #{tpu_custom_call.1} parent=1 // loop_body
      %s17 = ssub.s32 %s12, 1
      %s18 = ssub.s32 %s12, 2
      %s19 = sadd.s32 %s12, 1
      %s20 = ssub.s32 %s12, %s19
      %p21 = scmp.eq.s32.totalorder %s20, 0
      %s23 = sadd.s32 %s22, 1
      %s24 = scalar_select %p21, %s22, %s23
      %p27 = pneg %p21
      %p28 = scmp.eq.s32.totalorder %s12, 1
      %p29 = por %p27, %p28
      %p30 = scmp.ne.s32.totalorder %s22, %s25
      %p31 = scmp.eq.s32.totalorder %s12, 0
      %p32 = por %p30, %p31
      %p33 = scmp.ne.s32.totalorder %s22, %s25
      %p34 = scmp.eq.s32.totalorder %s17, 1
      %p35 = por %p33, %p34
      %p36 = scmp.ne.s32.totalorder %s25, %s26
      %p37 = scmp.eq.s32.totalorder %s17, 0
      %p38 = por %p36, %p37
      %p39 = scmp.ne.s32.totalorder %s25, %s26
      %p40 = scmp.eq.s32.totalorder %s18, 1
      %p41 = por %p39, %p40
      %p43 = scmp.ne.s32.totalorder %s26, %s42
      %p44 = scmp.eq.s32.totalorder %s18, 0
      %p45 = por %p43, %p44
      %s47 = sadd.s32 %s46, 1
      %p50 = scmp.eq.s32.totalorder %s12, 1
      %p51 = scmp.ne.s32.totalorder %s46, %s48
      %p52 = scmp.eq.s32.totalorder %s12, 0
      %p53 = por %p51, %p52
      %p54 = scmp.ne.s32.totalorder %s46, %s48
      %p55 = scmp.eq.s32.totalorder %s17, 1
      %p56 = por %p54, %p55
      %p57 = scmp.ne.s32.totalorder %s48, %s49
      %p58 = scmp.eq.s32.totalorder %s17, 0
      %p59 = por %p57, %p58
      %p60 = scmp.ne.s32.totalorder %s48, %s49
      %p61 = scmp.eq.s32.totalorder %s18, 1
      %p62 = por %p60, %p61
      %p64 = scmp.ne.s32.totalorder %s49, %s63
      %p65 = scmp.eq.s32.totalorder %s18, 0
      %p66 = por %p64, %p65
      %s68 = sadd.s32 %s67, 1
      %p71 = scmp.eq.s32.totalorder %s12, 1
      %p72 = scmp.ne.s32.totalorder %s67, %s69
      %p73 = scmp.eq.s32.totalorder %s12, 0
      %p74 = por %p72, %p73
      %p75 = scmp.ne.s32.totalorder %s67, %s69
      %p76 = scmp.eq.s32.totalorder %s17, 1
      %p77 = por %p75, %p76
      %p78 = scmp.ne.s32.totalorder %s69, %s70
      %p79 = scmp.eq.s32.totalorder %s17, 0
      %p80 = por %p78, %p79
      %p81 = scmp.ne.s32.totalorder %s69, %s70
      %p82 = scmp.eq.s32.totalorder %s18, 1
      %p83 = por %p81, %p82
      %p85 = scmp.ne.s32.totalorder %s70, %s84
      %p86 = scmp.eq.s32.totalorder %s18, 0
      %p87 = por %p85, %p86
      %s88 = ssub.s32 %s12, %s19
      %p89 = scmp.eq.s32.totalorder %s88, 0
      %s91 = sadd.s32 %s90, 1
      %s92 = scalar_select %p89, %s90, %s91
      %p95 = pneg %p89
      %p96 = scmp.eq.s32.totalorder %s12, 1
      %p97 = por %p95, %p96
      %p98 = scmp.ne.s32.totalorder %s90, %s93
      %p99 = scmp.eq.s32.totalorder %s12, 0
      %p100 = por %p98, %p99
      %p101 = scmp.ne.s32.totalorder %s90, %s93
      %p102 = scmp.eq.s32.totalorder %s17, 1
      %p103 = por %p101, %p102
      %p104 = scmp.ne.s32.totalorder %s93, %s94
      %p105 = scmp.eq.s32.totalorder %s17, 0
      %p106 = por %p104, %p105
      %p107 = scmp.ne.s32.totalorder %s93, %s94
      %p108 = scmp.eq.s32.totalorder %s18, 1
      %p109 = por %p107, %p108
      %p111 = scmp.ne.s32.totalorder %s94, %s110
      %p112 = scmp.eq.s32.totalorder %s18, 0
      %p113 = por %p111, %p112
      %p114 = scmp.le.s32.totalorder 1, %s12
      %p115 = scmp.lt.s32.totalorder %s12, 3
      %p116 = pnand %p114, %p115
      %p117 = pneg %p116
      // Predicated region
      $region9: #{tpu_custom_call.1} parent=5 // pred_check
        _
      $region10: #{tpu_custom_call.1} parent=5 // pred_check_branch
        %119 = sbr.rel (%p116) target = $region12
      $region11: #{tpu_custom_call.1} parent=5 // pred_region
        %s120 = ssub.s32 %s12, 1
        // Predicated region
        $region13: #{tpu_custom_call.1} parent=11 // pred_check
          %p121 = pneg %p59
        $region14: #{tpu_custom_call.1} parent=11 // pred_check_branch
          %123 = sbr.rel (%p121) target = $region16
        $region15: #{tpu_custom_call.1} parent=11 // pred_region
          _
        $region16: #{tpu_custom_call.1} parent=11 // pred_fallthru
          _
        // Predicated region
        $region17: #{tpu_custom_call.1} parent=11 // pred_check
          %p124 = pneg %p80
        $region18: #{tpu_custom_call.1} parent=11 // pred_check_branch
          %126 = sbr.rel (%p124) target = $region20
        $region19: #{tpu_custom_call.1} parent=11 // pred_region
          _
        $region20: #{tpu_custom_call.1} parent=11 // pred_fallthru
          _
      $region12: #{tpu_custom_call.1} parent=5 // pred_fallthru
        _
      %p127 = scmp.lt.s32.totalorder %s12, 2
      // Predicated region
      $region21: #{tpu_custom_call.1} parent=5 // pred_check
        %p128 = pneg %p127
      $region22: #{tpu_custom_call.1} parent=5 // pred_check_branch
        %130 = sbr.rel (%p128) target = $region24
      $region23: #{tpu_custom_call.1} parent=5 // pred_region
        // Predicated region
        $region25: #{tpu_custom_call.1} parent=23 // pred_check
          %p131 = pneg %p32
        $region26: #{tpu_custom_call.1} parent=23 // pred_check_branch
          %133 = sbr.rel (%p131) target = $region28
        $region27: #{tpu_custom_call.1} parent=23 // pred_region
          %p134 = scmp.lt.s32.totalorder %s12, 1
          %s135 = scalar_select %p134, %s12, 1
          %s136 = smul.addr %s135, 10
          %s137 = smul.addr %s136, 8
          %s138 = scalar_lea.vmem %s0, %s137
        $region28: #{tpu_custom_call.1} parent=23 // pred_fallthru
          _
      $region24: #{tpu_custom_call.1} parent=5 // pred_fallthru
        _
      %p139 = scmp.le.s32.totalorder 1, %s12
      %p140 = scmp.lt.s32.totalorder %s12, 3
      %p141 = pnand %p139, %p140
      %p142 = pneg %p141
      // Predicated region
      $region29: #{tpu_custom_call.1} parent=5 // pred_check
        _
      $region30: #{tpu_custom_call.1} parent=5 // pred_check_branch
        %144 = sbr.rel (%p141) target = $region32
      $region31: #{tpu_custom_call.1} parent=5 // pred_region
        %s145 = ssub.s32 %s12, 1
        %p146 = scmp.lt.s32.totalorder %s17, 1
        %s147 = scalar_select %p146, %s17, 1
        %s148 = smul.addr %s147, 10
        %s149 = smul.addr %s148, 8
        %s150 = scalar_lea.vmem %s0, %s149
        %p151 = pneg %p38
        %p152 = pneg %p35
        %p153 = pneg %p59
        %p154 = pneg %p56
        %p155 = pneg %p80
        %p156 = pneg %p77
        %p157 = pneg %p106
        %p158 = pneg %p103
        %s159 = sand.u32 %s93, 1
        %s160 = scalar_lea.sflag [#allocation3], %s159
        %s161 = sand.u32 %s93, 1
        %s162 = smul.addr %s161, 16
        %s163 = scalar_lea.vmem [#allocation2], %s162
        %p164 = scmp.lt.s32.totalorder %s17, 1
        %s165 = scalar_select %p164, %s17, 1
        %s166 = smul.addr %s165, 10
        %s167 = smul.addr %s166, 8
        %s168 = scalar_lea.vmem %s0, %s167
        %v169 = vld [vmem:[%s1] sm:$0xff]
        %v170 = vld [vmem:[%s1 + $0x8] sm:$0xff]
        %v171 = vld [vmem:[%s168] sm:$0xff]
        %v172 = vld [vmem:[%s168 + $0x8] sm:$0xff]
        %v173 = vld [vmem:[%s168 + $0x10] sm:$0xff]
        %v174 = vld [vmem:[%s168 + $0x18] sm:$0xff]
        %v175 = vld [vmem:[%s168 + $0x20] sm:$0xff]
        %v176 = vld [vmem:[%s168 + $0x28] sm:$0xff]
        %v177 = vld [vmem:[%s168 + $0x30] sm:$0xff]
        %v178 = vld [vmem:[%s168 + $0x38] sm:$0xff]
        %v179 = vld [vmem:[%s168 + $0x40] sm:$0xf]
        %v180 = vld [vmem:[%s168 + $0x48] sm:$0xf]
        %v181 = vld [vmem:[%s2] sm:$0xff]
        %v182 = vld [vmem:[%s2 + $0x8] sm:$0xff]
        %184 = vset.pattern.permute.xlu0 0
        %185 = vperm.xlu0 %184, %v181
        %v186 = vpop.permute.xlu0 %185
        %189 = vset.pattern.permute.xlu0 0
        %190 = vperm.xlu0 %189, %v182
        %v191 = vpop.permute.xlu0 %190
        %vm193 = vcmask 293888
        %v195 = vsel %vm193, %v169, 0
        %v198 = vsel %vm193, %v170, 0
        %vm200 = vcmask 1043456
        %v202 = vsel %vm200, %v179, 0
        %v205 = vsel %vm200, %v180, 0
        %207 = vmatpush.msra.mxu0 0.0
        %208 = vmatpush.msra.mxu0 0.0
        %209 = vmatpush.msra.mxu0 0.0
        %210 = vmatpush.msra.mxu0 0.0
        %211 = vmatpush.msra.mxu0 0.0
        %212 = vmatpush.msra.mxu0 0.0
        %213 = vmatpush.msra.mxu0 0.0
        %214 = vmatpush.msra.mxu0 0.0
        %215 = vmatpush.msra.mxu0 0.0
        %216 = vmatpush.msra.mxu0 0.0
        %217 = vmatpush.msra.mxu0 0.0
        %218 = vmatpush.msra.mxu0 %v202
        %219 = vmatpush.msra.mxu0 %v177
        %220 = vmatpush.msra.mxu0 %v175
        %221 = vmatpush.msra.mxu0 %v173
        %222 = vmatpush.msra.mxu0 %v171
        %223 = vmatmul.f32.gmra.mxu0 %v195
        %v224 = vpop.f32.mrf.mxu0
        %v225 = vadd.f32 %v186, %v224
        %226 = vmatmul.f32.gmra.mxu0 %v198
        %v227 = vpop.f32.mrf.mxu0
        %v228 = vadd.f32 %v191, %v227
        %229 = vdwg.mxu0
        %230 = vmatpush.msra.mxu0 0.0
        %231 = vmatpush.msra.mxu0 0.0
        %232 = vmatpush.msra.mxu0 0.0
        %233 = vmatpush.msra.mxu0 0.0
        %234 = vmatpush.msra.mxu0 0.0
        %235 = vmatpush.msra.mxu0 0.0
        %236 = vmatpush.msra.mxu0 0.0
        %237 = vmatpush.msra.mxu0 0.0
        %238 = vmatpush.msra.mxu0 0.0
        %239 = vmatpush.msra.mxu0 0.0
        %240 = vmatpush.msra.mxu0 0.0
        %241 = vmatpush.msra.mxu0 %v205
        %242 = vmatpush.msra.mxu0 %v178
        %243 = vmatpush.msra.mxu0 %v176
        %244 = vmatpush.msra.mxu0 %v174
        %245 = vmatpush.msra.mxu0 %v172
        %246 = vmatmul.f32.gmra.mxu0 %v195
        %v247 = vpop.f32.mrf.mxu0
        %v248 = vadd.f32 %v186, %v247
        %249 = vmatmul.f32.gmra.mxu0 %v198
        %v250 = vpop.f32.mrf.mxu0
        %v251 = vadd.f32 %v191, %v250
        %252 = vdwg.mxu0
        %v253 = vmax.f32 %v225, %v228
        %v254 = vmax.f32 %v248, %v251
        %255 = vst [vmem:[%s163] sm:$0xff] %v253
        %256 = vst [vmem:[%s163 + $0x8] sm:$0xff] %v254
        %s257 = sand.u32 %s93, 1
        %s258 = scalar_lea.sflag [#allocation3], %s257
        %s259 = sand.u32 %s93, 1
        %s260 = smul.addr %s259, 16
        %s261 = scalar_lea.vmem [#allocation2], %s260
        // Predicated region
        $region33: #{tpu_custom_call.1} parent=31 // pred_check
          %p262 = pneg %p103
        $region34: #{tpu_custom_call.1} parent=31 // pred_check_branch
          %264 = sbr.rel (%p262) target = $region36
        $region35: #{tpu_custom_call.1} parent=31 // pred_region
          %266 = vsyncadd %s258, 0
          %s267 = smul.addr %s17, 2
          %s268 = smul.addr %s267, 8
          %s269 = scalar_lea.hbm %s3, %s268
          %s271 = sshll.u32 %s261, 4
          %s272 = int_to_ptr.vmem [resolvable:$true] %s271
          %s273 = sshll.u32 %s269, 4
          %s274 = int_to_ptr.hbm [resolvable:$true] %s273
          %276 = dma.vmem_to_hbm [thread:$0]  %s272, 256, %s274, %s258
        $region36: #{tpu_custom_call.1} parent=31 // pred_fallthru
          _
      $region32: #{tpu_custom_call.1} parent=5 // pred_fallthru
        _
      %p277 = scmp.le.s32.totalorder 2, %s12
      // Predicated region
      $region37: #{tpu_custom_call.1} parent=5 // pred_check
        %p278 = pneg %p277
      $region38: #{tpu_custom_call.1} parent=5 // pred_check_branch
        %280 = sbr.rel (%p278) target = $region40
      $region39: #{tpu_custom_call.1} parent=5 // pred_region
        %s281 = ssub.s32 %s12, 2
        // Predicated region
        $region41: #{tpu_custom_call.1} parent=39 // pred_check
          %p282 = pneg %p109
        $region42: #{tpu_custom_call.1} parent=39 // pred_check_branch
          %284 = sbr.rel (%p282) target = $region44
        $region43: #{tpu_custom_call.1} parent=39 // pred_region
          %s285 = sand.u32 %s94, 1
          %s286 = scalar_lea.sflag [#allocation3], %s285
          %s287 = sand.u32 %s94, 1
          %s288 = smul.addr %s287, 16
          %s289 = scalar_lea.vmem [#allocation2], %s288
          %291 = dma.done %s286, 256
        $region44: #{tpu_custom_call.1} parent=39 // pred_fallthru
          _
      $region40: #{tpu_custom_call.1} parent=5 // pred_fallthru
        _
    $region6: #{tpu_custom_call.1} parent=1 // loop_footer
      %s16 = sadd.s32 1, %s12
    $region7: #{tpu_custom_call.1} parent=1 // loop_footer_branch
      %11 = sbr.rel target = $region3
    $region8: #{tpu_custom_call.1} parent=1 // loop_exit
      _
    %292 = vsyncpa [#allocation3], 1
    %s293 = scalar_lea.sflag [#allocation3], 1
    %294 = vsyncpa %s293, 1

</llo_original>
